<compile_context>
chip_gen: v7x
topology: tpu7x:2x2x1
jax: 0.10.0
libtpu: 0.0.40
codegen_flags: <defaults>
</compile_context>

<pallas_src>
import jax
import jax.numpy as jnp
from jax.experimental import pallas as pl
from jax.experimental.pallas import tpu as pltpu


def _round_up(a: int, m: int) -> int:
    return -(-a // m) * m


def scale_shift_kernel(w_ref, b_ref, x_ref, o_ref):
    # w_ref, b_ref: (1,) f32 scalars in SMEM.
    # x_ref, o_ref: (block_rows, lane) f32 tiles in VMEM.
    # Pure VPU fused scale-and-shift; scalar broadcast comes from SMEM.
    w = w_ref[0]
    b = b_ref[0]
    o_ref[...] = x_ref[...] * w + b


def adversary_forward(x, w, b, *, lane=1024, max_block_rows=1024,
                      pallas_min_elems=1 << 17):
    """Adversary.forward: y = x @ W^T + b for Linear(1, 1).

    x: (B, 1) f32, w: (1, 1) f32, b: (1,) f32 -> (B, 1) f32.
    """
    B, in_f = x.shape
    out_f, _ = w.shape
    assert in_f == 1 and out_f == 1, "Adversary is Linear(1, 1)"

    x = x.astype(jnp.float32)
    w_s = w.reshape(()).astype(jnp.float32)
    b_s = b.reshape(()).astype(jnp.float32)

    # Small / empty batches: a fused XLA elementwise op is strictly faster than
    # the pallas_call launch plus wrapper reshapes at this size.
    if B == 0 or B < pallas_min_elems:
        return (x * w_s + b_s).reshape(B, out_f)

    n = B
    rows = -(-n // lane)                      # ceil(B / lane)
    if rows <= 8:
        block_rows = rows                     # block equals full array dims
    else:
        # Aim for >= ~8 grid steps (keeps both v7x TensorCores busy on the
        # "parallel" axis) while growing tiles up to 4 MiB to amortize the
        # fixed per-grid-step overhead.  Keep a multiple of 8 (sublane).
        block_rows = max(8, min(max_block_rows, _round_up(-(-rows // 8), 8)))
    grid = (-(-rows // block_rows),)          # partial last block is masked

    # Lane-dense slab; pad only up to a multiple of `lane` (<= lane-1 elems).
    n_pad = rows * lane
    xf = x.reshape(-1)
    if n_pad != n:
        xf = jnp.pad(xf, (0, n_pad - n))
    x2 = xf.reshape(rows, lane)

    w1 = w.reshape(1).astype(jnp.float32)     # (1,) SMEM scalar
    b1 = b.reshape(1).astype(jnp.float32)     # (1,) SMEM scalar

    out2 = pl.pallas_call(
        scale_shift_kernel,
        out_shape=jax.ShapeDtypeStruct((rows, lane), jnp.float32),
        grid=grid,
        in_specs=[
            pl.BlockSpec(memory_space=pltpu.MemorySpace.SMEM),   # w scalar
            pl.BlockSpec(memory_space=pltpu.MemorySpace.SMEM),   # b scalar
            pl.BlockSpec((block_rows, lane), lambda i: (i, 0)),  # x tile
        ],
        out_specs=pl.BlockSpec((block_rows, lane), lambda i: (i, 0)),
        compiler_params=pltpu.CompilerParams(
            dimension_semantics=("parallel",),
            vmem_limit_bytes=32 * 1024 * 1024,
        ),
        cost_estimate=pl.CostEstimate(
            flops=2 * n_pad, transcendentals=0, bytes_accessed=8 * n_pad),
    )(w1, b1, x2)

    if n_pad == n:
        # Aligned batch: no pad, no slice — just a metadata reshape.
        return out2.reshape(B, out_f)
    return out2.reshape(-1)[:n].reshape(B, out_f)


if __name__ == "__main__":
    key = jax.random.PRNGKey(0)
    kx, kw, kb, kx2, kx3 = jax.random.split(key, 5)

    # Deterministic parameters mimicking PyTorch's default Linear init
    # (uniform in [-1/sqrt(in_features), 1/sqrt(in_features)] = [-1, 1] here).
    w = jax.random.uniform(kw, (1, 1), jnp.float32, minval=-1.0, maxval=1.0)
    b = jax.random.uniform(kb, (1,), jnp.float32, minval=-1.0, maxval=1.0)

    # 1) Tiny batch, default path (small-input JAX fast path).
    x = jax.random.normal(kx, (8, 1), jnp.float32)
    out = jax.block_until_ready(adversary_forward(x, w, b))
    ref = x @ w.T + b
    assert out.shape == (8, 1)
    assert jnp.allclose(out, ref, atol=1e-6, rtol=1e-6)

    # 2) Unaligned batch forced through the Pallas path (pad + tail slice).
    x_odd = jax.random.normal(kx2, (1537, 1), jnp.float32)
    out_odd = jax.block_until_ready(
        adversary_forward(x_odd, w, b, pallas_min_elems=0))
    ref_odd = x_odd @ w.T + b
    assert out_odd.shape == (1537, 1)
    assert jnp.allclose(out_odd, ref_odd, atol=1e-6, rtol=1e-6)

    # 3) Lane-aligned batch forced through the Pallas path (pad-free/slice-free).
    x_al = jax.random.normal(kx3, (2048, 1), jnp.float32)
    out_al = jax.block_until_ready(
        adversary_forward(x_al, w, b, pallas_min_elems=0))
    ref_al = x_al @ w.T + b
    assert out_al.shape == (2048, 1)
    assert jnp.allclose(out_al, ref_al, atol=1e-6, rtol=1e-6)

    # 4) Exercise the masked partial-last-block path (grid=2, 13 rows, block 8).
    out_pb = jax.block_until_ready(
        adversary_forward(x_odd, w, b, lane=128, max_block_rows=8,
                          pallas_min_elems=0))
    assert out_pb.shape == (1537, 1)
    assert jnp.allclose(out_pb, ref_odd, atol=1e-6, rtol=1e-6)

    print("KERNEL_OK")
</pallas_src>

<mosaic_0001>
module attributes {stable_mosaic.version = 11 : i64} {
  func.func @scale_shift_kernel(%arg0: i32, %arg1: memref<1xf32, #tpu.memory_space<smem>>, %arg2: memref<1xf32, #tpu.memory_space<smem>>, %arg3: memref<2x1024xf32, #tpu.memory_space<vmem>>, %arg4: memref<2x1024xf32, #tpu.memory_space<vmem>>) attributes {dimension_semantics = [#tpu.dimension_semantics<parallel>], iteration_bounds = array<i64: 1>, scalar_prefetch = 0 : i64, scratch_operands = 0 : i64, tpu.core_type = #tpu.core_type<tc>, window_params = [{transform_indices = @transform_0, window_bounds = array<i64: 1>}, {transform_indices = @transform_1, window_bounds = array<i64: 1>}, {transform_indices = @transform_2, window_bounds = array<i64: 2, 1024>}, {transform_indices = @transform_3, window_bounds = array<i64: 2, 1024>}]} {
    %c0 = arith.constant 0 : index
    %0 = memref.load %arg1[%c0] : memref<1xf32, #tpu.memory_space<smem>>
    %c0_0 = arith.constant 0 : index
    %1 = memref.load %arg2[%c0_0] : memref<1xf32, #tpu.memory_space<smem>>
    %c0_1 = arith.constant 0 : index
    %c0_2 = arith.constant 0 : index
    %2 = vector.load %arg3[%c0_1, %c0_2] : memref<2x1024xf32, #tpu.memory_space<vmem>>, vector<2x1024xf32>
    %3 = vector.broadcast %0 : f32 to vector<2x1024xf32>
    %4 = arith.mulf %2, %3 : vector<2x1024xf32>
    %5 = vector.broadcast %1 : f32 to vector<2x1024xf32>
    %6 = arith.addf %4, %5 : vector<2x1024xf32>
    %c0_3 = arith.constant 0 : index
    %c0_4 = arith.constant 0 : index
    %7 = vector.load %arg4[%c0_3, %c0_4] : memref<2x1024xf32, #tpu.memory_space<vmem>>, vector<2x1024xf32>
    tpu.vector_store %arg4[%c0_3, %c0_4], %6 {strides = array<i32>} : memref<2x1024xf32, #tpu.memory_space<vmem>>, vector<2x1024xf32>,
    return
  }
  func.func @transform_0(%arg0: i32) -> i32 {
    %c0_i32 = arith.constant 0 : i32
    %c0_i32_0 = arith.constant 0 : i32
    return %c0_i32 : i32
  }
  func.func @transform_1(%arg0: i32) -> i32 {
    %c0_i32 = arith.constant 0 : i32
    %c0_i32_0 = arith.constant 0 : i32
    return %c0_i32 : i32
  }
  func.func @transform_2(%arg0: i32) -> (i32, i32) {
    %c0_i32 = arith.constant 0 : i32
    %c0_i32_0 = arith.constant 0 : i32
    return %arg0, %c0_i32 : i32, i32
  }
  func.func @transform_3(%arg0: i32) -> (i32, i32) {
    %c0_i32 = arith.constant 0 : i32
    %c0_i32_0 = arith.constant 0 : i32
    return %arg0, %c0_i32 : i32, i32
  }
}

</mosaic_0001>

<llo_original>
// kernel: tpu_custom_call.1
$region0: #{tpu_custom_call.1}
  #allocation0 [shape = 'u32[]', space=smem, size = 0x4, offset = 0x4, fixed_abs, tag = 'smem constant byte address 0x4 - core index']
  #allocation1 [shape = 'u32[144,128]{1,0:T(1,128)}', space=vmem, size = 0x12000, scoped, tag = 'internal scratch']
  #allocation2 [shape = 'f32[1]{0:T(128)S(6)}', space=smem, size = 0x200, scoped, tag = 'scoped memory for tpu_custom_call.1']
  #allocation3 [shape = 'f32[1]{0:T(128)S(6)}', space=smem, size = 0x200, scoped, tag = 'scoped memory for tpu_custom_call.1']
  %s0 = inlined_call_operand.<no memory space> [shape: f32[1], index: 0, kind: input, shape index: {}]
  %s1 = inlined_call_operand.<no memory space> [shape: f32[1], index: 1, kind: input, shape index: {}]
  %s2 = inlined_call_operand.hbm [shape: f32[2,1024], index: 2, kind: input, shape index: {}]
  %s3 = inlined_call_operand.hbm [shape: f32[2,1024], index: 3, kind: output, shape index: {}]
  %s4 = sld [smem:[#allocation0]]
  $region26: #{tpu_custom_call.1} parent=0
    _
  %s6 = ssub.s32 1, %s4
  %s7 = scalar_select 0, %s6, %s4
  %8 = sst [smem:[#allocation2]] %s0
  %9 = sst [smem:[#allocation3]] %s1
  $region1: #{tpu_custom_call.1} parent=0
    #allocation4 [shape = 'u8[8192]{0}', space=vmem, size = 0x2000, scoped, tag = 'input window, operand 2, single buffered']
    #allocation5 [shape = 's32[1]{0}', space=sflag, size = 0x4, scoped, tag = 'scoped memory for tpu_custom_call.1']
    #allocation6 [shape = 's32[1]{0}', space=sflag, size = 0x4, scoped, tag = 'scoped memory for tpu_custom_call.1']
    #allocation7 [shape = 'u8[8192]{0}', space=vmem, size = 0x2000, scoped, tag = 'output window, operand 0, single buffered']
    %10 = vsyncpa [#allocation5], 0
    %11 = vsyncpa [#allocation6], 0
    // Predicated region
    $region2: #{tpu_custom_call.1} parent=1 // pred_check
      _
    $region3: #{tpu_custom_call.1} parent=1 // pred_check_branch
      %13 = sbr.rel (0) target = $region5
    $region4: #{tpu_custom_call.1} parent=1 // pred_region
      _
    $region5: #{tpu_custom_call.1} parent=1 // pred_fallthru
      _
    // Predicated region
    $region6: #{tpu_custom_call.1} parent=1 // pred_check
      _
    $region7: #{tpu_custom_call.1} parent=1 // pred_check_branch
      %15 = sbr.rel (0) target = $region9
    $region8: #{tpu_custom_call.1} parent=1 // pred_region
      _
    $region9: #{tpu_custom_call.1} parent=1 // pred_fallthru
      _
    // Predicated region
    $region10: #{tpu_custom_call.1} parent=1 // pred_check
      _
    $region11: #{tpu_custom_call.1} parent=1 // pred_check_branch
      %17 = sbr.rel (0) target = $region13
    $region12: #{tpu_custom_call.1} parent=1 // pred_region
      %s19 = ssub.s32 256, 256
      %20 = vsyncadd [#allocation5], %s19
      %s22 = sshll.u32 [#allocation4], 4
      %s23 = int_to_ptr.vmem [resolvable:$true] %s22
      %25 = dma.hbm_to_vmem [thread:$0]  %s2, 256, %s23, [#allocation5]
    $region13: #{tpu_custom_call.1} parent=1 // pred_fallthru
      _
    // Predicated region
    $region14: #{tpu_custom_call.1} parent=1 // pred_check
      _
    $region15: #{tpu_custom_call.1} parent=1 // pred_check_branch
      %27 = sbr.rel (0) target = $region17
    $region16: #{tpu_custom_call.1} parent=1 // pred_region
      %28 = dma.done [#allocation5], 256
    $region17: #{tpu_custom_call.1} parent=1 // pred_fallthru
      _
    %s29 = sld [smem:[#allocation2]]
    %s30 = sld [smem:[#allocation3]]
    %v31 = vld [vmem:[#allocation4] sm:$0xff]
    %v32 = vld [vmem:[#allocation4 + $0x8] sm:$0xff]
    %v33 = vstv %s29
    %v34 = vmul.f32 %v31, %v33
    %v35 = vmul.f32 %v32, %v33
    %v36 = vstv %s30
    %v37 = vadd.f32 %v34, %v36
    %v38 = vadd.f32 %v35, %v36
    %39 = vst [vmem:[#allocation7] sm:$0xff] %v37
    %40 = vst [vmem:[#allocation7 + $0x8] sm:$0xff] %v38
    // Predicated region
    $region18: #{tpu_custom_call.1} parent=1 // pred_check
      _
    $region19: #{tpu_custom_call.1} parent=1 // pred_check_branch
      %42 = sbr.rel (0) target = $region21
    $region20: #{tpu_custom_call.1} parent=1 // pred_region
      %s44 = ssub.s32 256, 256
      %45 = vsyncadd [#allocation6], %s44
      %s47 = sshll.u32 [#allocation7], 4
      %s48 = int_to_ptr.vmem [resolvable:$true] %s47
      %50 = dma.vmem_to_hbm [thread:$0]  %s48, 256, %s3, [#allocation6]
    $region21: #{tpu_custom_call.1} parent=1 // pred_fallthru
      _
    // Predicated region
    $region22: #{tpu_custom_call.1} parent=1 // pred_check
      _
    $region23: #{tpu_custom_call.1} parent=1 // pred_check_branch
      %52 = sbr.rel (0) target = $region25
    $region24: #{tpu_custom_call.1} parent=1 // pred_region
      %53 = dma.done [#allocation6], 256
    $region25: #{tpu_custom_call.1} parent=1 // pred_fallthru
      _
    %54 = vsyncpa [#allocation5], 1
    %55 = vsyncpa [#allocation6], 1

</llo_original>
